<compile_context>
chip_gen: v5e
topology: v5e:2x2
jax: 0.10.0
libtpu: 0.0.40
codegen_flags: <defaults>
</compile_context>

<pallas_src>
import functools

import jax
import jax.numpy as jnp
from jax.experimental import pallas as pl
from jax.experimental.pallas import tpu as pltpu

# ---- synthetic config (small shapes, consistent with the module) ----
B = 2            # batch
C = 32           # opt.in_planes
HH = WW = 4      # spatial -> N = 16 tokens
N = HH * WW
BLOCK = 3        # opt.block (>1 path)
NCLASSES = 10    # opt.nclasses
BOTTLENECK = 16  # ClassBlock num_bottleneck
BN_EPS = 1e-5
NH = BLOCK + 1   # number of classifier heads (global + parts)

# PyTorch chunking convention: [int(N/BLOCK)] * (BLOCK-1) + [remainder-last]
# For N=16, BLOCK=3 this is [5, 5, 6] (matches the reference module).
_split_each = N / BLOCK
SPLIT_SIZES = [int(_split_each)] * (BLOCK - 1)
SPLIT_SIZES.append(N - sum(SPLIT_SIZES))
SPLIT_BOUNDS = [0]
for _s in SPLIT_SIZES:
    SPLIT_BOUNDS.append(SPLIT_BOUNDS[-1] + _s)

# Packed operand / output widths
W1_ROWS = NH * C                       # 128
FEAT_W = NH * BOTTLENECK               # 64
CLS_W = NH * NCLASSES                  # 40 (zero-padded to FEAT_W in the slab)
OUT_W = 2 * FEAT_W                     # 128-lane output slab


# ---------------------------------------------------------------------------
# Fused kernel: heatmap ranking + all pooling + all ClassBlocks
# ---------------------------------------------------------------------------
def _fsra_fused_kernel(x_ref, w_ref, b_ref, out_ref):
    x = x_ref[...].astype(jnp.float32)                      # (B, C, N)

    # Per-token heat value: mean over channels (sublane reduce on (B, C, N)).
    heat = jnp.mean(x, axis=1)                               # (B, N)

    # Stable descending rank of each token's heat value (ties -> lower index
    # first, matching a stable argsort(-heat)).  Pure VPU NxN compare; rank
    # stays int32 (no bool->f32 cast before the reduction).
    h_i = heat[:, :, None]                                   # (B, N, 1)
    h_j = heat[:, None, :]                                   # (B, 1, N)
    idx_i = jax.lax.broadcasted_iota(jnp.int32, (1, N, N), 1)
    idx_j = jax.lax.broadcasted_iota(jnp.int32, (1, N, N), 2)
    beats = (h_j > h_i) | ((h_j == h_i) & (idx_j < idx_i))   # (B, N, N)
    rank = jnp.sum(beats.astype(jnp.int32), axis=2)          # (B, N) int32

    # Pooling-weight tensor (B, NH, N): head 0 = 1/N (global mean), head k+1 =
    # (rank in chunk k) / chunk_size.  Chunk means are permutation invariant
    # within a chunk, so this equals the mean over the sorted split.
    hidx = jax.lax.broadcasted_iota(jnp.int32, (1, NH, 1), 1)
    rank_b = rank[:, None, :]                                # (B, 1, N)
    pw = jnp.zeros((B, NH, N), jnp.float32)
    pw = jnp.where(hidx == 0, 1.0 / N, pw)
    for k in range(BLOCK):
        in_chunk = (rank_b >= SPLIT_BOUNDS[k]) & (rank_b < SPLIT_BOUNDS[k + 1])
        pw = jnp.where((hidx == k + 1) & in_chunk, 1.0 / SPLIT_SIZES[k], pw)

    # One contraction produces all NH head inputs at once: (B, NH, C).
    pooled = jnp.einsum('bhn,bcn->bhc', pw, x,
                        preferred_element_type=jnp.float32)
    # Head-concatenated classifier input, lane layout (B, NH*C) = (B, 128).
    x_cat = jnp.concatenate([pooled[:, h, :] for h in range(NH)], axis=-1)

    bias = b_ref[...]                                        # (1, 128)

    # Fused ClassBlocks: (Linear + folded-BN) -> Linear with block-diagonal
    # weights, one matmul pair for all NH heads.
    feat = jnp.dot(x_cat, w_ref[:W1_ROWS, :],
                   preferred_element_type=jnp.float32)
    feat = feat + bias[:, :FEAT_W]                           # (B, 64)
    cls = jnp.dot(feat, w_ref[W1_ROWS:, :],
                  preferred_element_type=jnp.float32)
    cls = cls + bias[:, FEAT_W:]                             # (B, 64), lanes 40..63 == 0

    # Single unmasked 128-lane store: feat in lanes 0..63, cls in 64..103.
    out_ref[...] = jnp.concatenate([feat, cls], axis=-1)


def fsra_fused(x_cn, packed_params):
    w_slab, b_slab = packed_params
    flops = (2 * B * NH * N * C                      # pooling contraction
             + 2 * B * W1_ROWS * FEAT_W              # linear 1
             + 2 * B * FEAT_W * FEAT_W               # linear 2 (padded)
             + 4 * B * N * N)                        # rank compare
    bytes_accessed = 4 * (B * C * N + w_slab.size + b_slab.size + B * OUT_W)
    vspec = pl.BlockSpec(memory_space=pltpu.MemorySpace.VMEM)
    return pl.pallas_call(
        _fsra_fused_kernel,
        out_shape=jax.ShapeDtypeStruct((B, OUT_W), jnp.float32),
        in_specs=[vspec, vspec, vspec],
        out_specs=vspec,
        cost_estimate=pl.CostEstimate(flops=flops, transcendentals=0,
                                      bytes_accessed=bytes_accessed),
    )(x_cn, w_slab, b_slab)


# ---------------------------------------------------------------------------
# Parameter init (deterministic, synthetic) -- one ClassBlock per head
# ---------------------------------------------------------------------------
def init_params(key):
    k1, k2, k3, k4 = jax.random.split(key, 4)
    w1 = jax.random.normal(k1, (NH, C, BOTTLENECK), jnp.float32) * 0.05
    b1 = jax.random.normal(k2, (NH, 1, BOTTLENECK), jnp.float32) * 0.01
    w2 = jax.random.normal(k3, (NH, BOTTLENECK, NCLASSES), jnp.float32) * 0.05
    b2 = jax.random.normal(k4, (NH, 1, NCLASSES), jnp.float32) * 0.01
    # BatchNorm1d eval params: gamma=1, beta=0, running_mean=0, running_var=1
    gamma = jnp.ones((NH, 1, BOTTLENECK), jnp.float32)
    beta = jnp.zeros((NH, 1, BOTTLENECK), jnp.float32)
    r_mean = jnp.zeros((NH, 1, BOTTLENECK), jnp.float32)
    r_var = jnp.ones((NH, 1, BOTTLENECK), jnp.float32)
    scale = gamma / jnp.sqrt(r_var + BN_EPS)
    shift = beta - r_mean * scale
    return (w1, b1, scale, shift, w2, b2)


def _block_diag(mats):
    """(NH, r, c) per-head matrices -> (NH*r, NH*c) block-diagonal matrix."""
    nh, r, c = mats.shape
    out = jnp.zeros((nh * r, nh * c), mats.dtype)
    for i in range(nh):
        out = out.at[i * r:(i + 1) * r, i * c:(i + 1) * c].set(mats[i])
    return out


def pack_params(params):
    """Fold eval-BN into linear1 and coalesce all ClassBlock params into two
    lane-dense slabs (done once at init, outside the kernel)."""
    w1, b1, scale, shift, w2, b2 = params
    # Eval BN fold: (x @ w1 + b1) * scale + shift == x @ (w1*scale) + (b1*scale+shift)
    w1f = w1 * scale                                        # (NH, C, BOT)
    b1f = b1 * scale + shift                                # (NH, 1, BOT)

    w1_bd = _block_diag(w1f)                                # (NH*C, NH*BOT) = (128, 64)
    w2_bd = _block_diag(w2)                                 # (NH*BOT, NH*NC) = (64, 40)
    w2_pad = jnp.zeros((FEAT_W, FEAT_W), jnp.float32).at[:, :CLS_W].set(w2_bd)
    w_slab = jnp.concatenate([w1_bd, w2_pad], axis=0)       # (192, 64)

    b_slab = jnp.zeros((1, OUT_W), jnp.float32)
    b_slab = b_slab.at[:, :FEAT_W].set(b1f.reshape(1, FEAT_W))
    b_slab = b_slab.at[:, FEAT_W:FEAT_W + CLS_W].set(b2.reshape(1, CLS_W))
    return (w_slab, b_slab)


# ---------------------------------------------------------------------------
# FSRA_CNN forward (eval mode, block > 1 path)
# ---------------------------------------------------------------------------
@functools.partial(jax.jit, static_argnames=("training",))
def fsra_forward(features, packed_params, training=False):
    b, c, h, w = features.shape
    x_cn = features.reshape(b, c, h * w)        # free trailing-dim collapse (B, C, N)

    out = fsra_fused(x_cn, packed_params)       # (B, 128) slab

    feat_r = out[:, :FEAT_W].reshape(b, NH, BOTTLENECK)
    cls_r = out[:, FEAT_W:FEAT_W + CLS_W].reshape(b, NH, NCLASSES)

    total_cls = [cls_r[:, i, :] for i in range(NH)]
    if not training:
        # torch.stack(total_features, dim=-1) -> (B, bottleneck, block+1)
        total_features = jnp.transpose(feat_r, (0, 2, 1))
    else:
        total_features = [feat_r[:, i, :] for i in range(NH)]
    return [total_cls, total_features]


# ---------------------------------------------------------------------------
# Pure-JAX reference for correctness checking (mirrors the PyTorch module)
# ---------------------------------------------------------------------------
def ref_forward(features, params):
    w1, b1, scale, shift, w2, b2 = params
    b, c, h, w = features.shape
    tokens = jnp.transpose(features.reshape(b, c, h * w), (0, 2, 1))
    gmean = jnp.mean(tokens, axis=1)
    heat = jnp.mean(tokens, axis=2)
    arg = jnp.argsort(-heat, axis=1)                        # stable descending
    xs = jnp.take_along_axis(tokens, arg[:, :, None], axis=1)

    def cb(i, x):
        hh = x @ w1[i] + b1[i]
        f = hh * scale[i] + shift[i]
        return f @ w2[i] + b2[i], f

    cls0, f0 = cb(0, gmean)
    cls_list, feat_list = [cls0], [f0]
    start = 0
    for j, sz in enumerate(SPLIT_SIZES):
        part = jnp.mean(xs[:, start:start + sz, :], axis=1)
        start += sz
        cj, fj = cb(j + 1, part)
        cls_list.append(cj)
        feat_list.append(fj)
    return cls_list, jnp.stack(feat_list, axis=-1)


if __name__ == "__main__":
    key = jax.random.PRNGKey(0)
    kx, kp = jax.random.split(key)
    x = jax.random.normal(kx, (B, C, HH, WW), jnp.float32)   # NCHW, like PyTorch
    params = init_params(kp)
    packed = pack_params(params)

    total_cls, total_features = fsra_forward(x, packed, training=False)
    jax.block_until_ready(total_features)
    for cls in total_cls:
        jax.block_until_ready(cls)

    # correctness check against pure-JAX reference
    ref_cls, ref_feat = ref_forward(x, params)
    for got, want in zip(total_cls, ref_cls):
        assert jnp.allclose(got, want, atol=1e-4, rtol=1e-4)
    assert jnp.allclose(total_features, ref_feat, atol=1e-4, rtol=1e-4)
    assert total_features.shape == (B, BOTTLENECK, BLOCK + 1)
    assert all(c.shape == (B, NCLASSES) for c in total_cls)

    print("KERNEL_OK")
</pallas_src>

<mosaic_0001>
module attributes {stable_mosaic.version = 11 : i64} {
  func.func @_fsra_fused_kernel(%arg0: memref<2x32x16xf32, #tpu.memory_space<vmem>>, %arg1: memref<192x64xf32, #tpu.memory_space<vmem>>, %arg2: memref<1x128xf32, #tpu.memory_space<vmem>>, %arg3: memref<2x128xf32, #tpu.memory_space<vmem>>) attributes {dimension_semantics = [], scalar_prefetch = 0 : i64, scratch_operands = 0 : i64, tpu.core_type = #tpu.core_type<tc>} {
    %c0 = arith.constant 0 : index
    %c0_0 = arith.constant 0 : index
    %c0_1 = arith.constant 0 : index
    %0 = vector.load %arg0[%c0, %c0_0, %c0_1] : memref<2x32x16xf32, #tpu.memory_space<vmem>>, vector<2x32x16xf32>
    %cst = arith.constant dense<0.000000e+00> : vector<2x16xf32>
    %1 = vector.multi_reduction <add>, %0, %cst [1] : vector<2x32x16xf32> to vector<2x16xf32>
    %cst_2 = arith.constant 3.200000e+01 : f32
    %2 = vector.broadcast %cst_2 : f32 to vector<2x16xf32>
    %3 = arith.divf %1, %2 : vector<2x16xf32>
    %4 = vector.shape_cast %3 : vector<2x16xf32> to vector<2x16x1xf32>
    %5 = vector.shape_cast %3 : vector<2x16xf32> to vector<2x1x16xf32>
    %6 = tpu.iota {dimensions = array<i32: 1>} : vector<1x16x16xi32>
    %7 = tpu.iota {dimensions = array<i32: 2>} : vector<1x16x16xi32>
    %8 = vector.broadcast %5 : vector<2x1x16xf32> to vector<2x16x16xf32>
    %9 = vector.broadcast %4 : vector<2x16x1xf32> to vector<2x16x16xf32>
    %10 = arith.cmpf ogt, %8, %9 : vector<2x16x16xf32>
    %11 = vector.broadcast %5 : vector<2x1x16xf32> to vector<2x16x16xf32>
    %12 = vector.broadcast %4 : vector<2x16x1xf32> to vector<2x16x16xf32>
    %13 = arith.cmpf oeq, %11, %12 : vector<2x16x16xf32>
    %14 = arith.cmpi slt, %7, %6 : vector<1x16x16xi32>
    %15 = vector.broadcast %14 : vector<1x16x16xi1> to vector<2x16x16xi1>
    %16 = arith.andi %13, %15 : vector<2x16x16xi1>
    %17 = arith.ori %10, %16 : vector<2x16x16xi1>
    %18 = arith.extui %17 : vector<2x16x16xi1> to vector<2x16x16xi32>
    %cst_3 = arith.constant dense<0> : vector<2x16xi32>
    %19 = vector.multi_reduction <add>, %18, %cst_3 [2] : vector<2x16x16xi32> to vector<2x16xi32>
    %20 = tpu.iota {dimensions = array<i32: 1>} : vector<1x4x1xi32>
    %21 = vector.shape_cast %19 : vector<2x16xi32> to vector<2x1x16xi32>
    %cst_4 = arith.constant 0.000000e+00 : f32
    %22 = vector.broadcast %cst_4 : f32 to vector<2x4x16xf32>
    %c0_i32 = arith.constant 0 : i32
    %23 = vector.broadcast %c0_i32 : i32 to vector<1x4x1xi32>
    %24 = arith.cmpi eq, %20, %23 : vector<1x4x1xi32>
    %cst_5 = arith.constant 6.250000e-02 : f32
    %25 = vector.shape_cast %24 : vector<1x4x1xi1> to vector<1x4x1xi1>
    %26 = vector.broadcast %25 : vector<1x4x1xi1> to vector<2x4x16xi1>
    %27 = vector.broadcast %cst_5 : f32 to vector<2x4x16xf32>
    %28 = arith.select %26, %27, %22 : vector<2x4x16xi1>, vector<2x4x16xf32>
    %c0_i32_6 = arith.constant 0 : i32
    %29 = vector.broadcast %c0_i32_6 : i32 to vector<2x1x16xi32>
    %30 = arith.cmpi sge, %21, %29 : vector<2x1x16xi32>
    %c5_i32 = arith.constant 5 : i32
    %31 = vector.broadcast %c5_i32 : i32 to vector<2x1x16xi32>
    %32 = arith.cmpi slt, %21, %31 : vector<2x1x16xi32>
    %33 = arith.andi %30, %32 : vector<2x1x16xi1>
    %c1_i32 = arith.constant 1 : i32
    %34 = vector.broadcast %c1_i32 : i32 to vector<1x4x1xi32>
    %35 = arith.cmpi eq, %20, %34 : vector<1x4x1xi32>
    %36 = vector.broadcast %35 : vector<1x4x1xi1> to vector<2x4x16xi1>
    %37 = vector.broadcast %33 : vector<2x1x16xi1> to vector<2x4x16xi1>
    %38 = arith.andi %36, %37 : vector<2x4x16xi1>
    %cst_7 = arith.constant 2.000000e-01 : f32
    %39 = vector.broadcast %cst_7 : f32 to vector<2x4x16xf32>
    %40 = arith.select %38, %39, %28 : vector<2x4x16xi1>, vector<2x4x16xf32>
    %c5_i32_8 = arith.constant 5 : i32
    %41 = vector.broadcast %c5_i32_8 : i32 to vector<2x1x16xi32>
    %42 = arith.cmpi sge, %21, %41 : vector<2x1x16xi32>
    %c10_i32 = arith.constant 10 : i32
    %43 = vector.broadcast %c10_i32 : i32 to vector<2x1x16xi32>
    %44 = arith.cmpi slt, %21, %43 : vector<2x1x16xi32>
    %45 = arith.andi %42, %44 : vector<2x1x16xi1>
    %c2_i32 = arith.constant 2 : i32
    %46 = vector.broadcast %c2_i32 : i32 to vector<1x4x1xi32>
    %47 = arith.cmpi eq, %20, %46 : vector<1x4x1xi32>
    %48 = vector.broadcast %47 : vector<1x4x1xi1> to vector<2x4x16xi1>
    %49 = vector.broadcast %45 : vector<2x1x16xi1> to vector<2x4x16xi1>
    %50 = arith.andi %48, %49 : vector<2x4x16xi1>
    %cst_9 = arith.constant 2.000000e-01 : f32
    %51 = vector.broadcast %cst_9 : f32 to vector<2x4x16xf32>
    %52 = arith.select %50, %51, %40 : vector<2x4x16xi1>, vector<2x4x16xf32>
    %c10_i32_10 = arith.constant 10 : i32
    %53 = vector.broadcast %c10_i32_10 : i32 to vector<2x1x16xi32>
    %54 = arith.cmpi sge, %21, %53 : vector<2x1x16xi32>
    %c16_i32 = arith.constant 16 : i32
    %55 = vector.broadcast %c16_i32 : i32 to vector<2x1x16xi32>
    %56 = arith.cmpi slt, %21, %55 : vector<2x1x16xi32>
    %57 = arith.andi %54, %56 : vector<2x1x16xi1>
    %c3_i32 = arith.constant 3 : i32
    %58 = vector.broadcast %c3_i32 : i32 to vector<1x4x1xi32>
    %59 = arith.cmpi eq, %20, %58 : vector<1x4x1xi32>
    %60 = vector.broadcast %59 : vector<1x4x1xi1> to vector<2x4x16xi1>
    %61 = vector.broadcast %57 : vector<2x1x16xi1> to vector<2x4x16xi1>
    %62 = arith.andi %60, %61 : vector<2x4x16xi1>
    %cst_11 = arith.constant 0.166666672 : f32
    %63 = vector.broadcast %cst_11 : f32 to vector<2x4x16xf32>
    %64 = arith.select %62, %63, %52 : vector<2x4x16xi1>, vector<2x4x16xf32>
    "tpu.trace_start"() <{level = 10 : i32, message = "bhn,bcn->bhc"}> : () -> ()
    %cst_12 = arith.constant dense<0.000000e+00> : vector<2x4x32xf32>
    %65 = tpu.matmul %64, %0, %cst_12 {dimension_numbers = #tpu.dot_dimension_numbers<[2], [2], [1], [1], [0, 0, 0, 1, 1, 1], [0], [0]>} : vector<2x4x16xf32>, vector<2x32x16xf32>, vector<2x4x32xf32> -> vector<2x4x32xf32>
    "tpu.trace_stop"() : () -> ()
    %66 = vector.extract_strided_slice %65 {offsets = [0, 0, 0], sizes = [2, 1, 32], strides = [1, 1, 1]} : vector<2x4x32xf32> to vector<2x1x32xf32>
    %67 = vector.shape_cast %66 : vector<2x1x32xf32> to vector<2x32xf32>
    %68 = vector.extract_strided_slice %65 {offsets = [0, 1, 0], sizes = [2, 1, 32], strides = [1, 1, 1]} : vector<2x4x32xf32> to vector<2x1x32xf32>
    %69 = vector.shape_cast %68 : vector<2x1x32xf32> to vector<2x32xf32>
    %70 = vector.extract_strided_slice %65 {offsets = [0, 2, 0], sizes = [2, 1, 32], strides = [1, 1, 1]} : vector<2x4x32xf32> to vector<2x1x32xf32>
    %71 = vector.shape_cast %70 : vector<2x1x32xf32> to vector<2x32xf32>
    %72 = vector.extract_strided_slice %65 {offsets = [0, 3, 0], sizes = [2, 1, 32], strides = [1, 1, 1]} : vector<2x4x32xf32> to vector<2x1x32xf32>
    %73 = vector.shape_cast %72 : vector<2x1x32xf32> to vector<2x32xf32>
    %74 = tpu.concatenate %67, %69, %71, %73 in 1 : vector<2x32xf32>, vector<2x32xf32>, vector<2x32xf32>, vector<2x32xf32> -> vector<2x128xf32>
    %c0_13 = arith.constant 0 : index
    %c0_14 = arith.constant 0 : index
    %75 = vector.load %arg2[%c0_13, %c0_14] : memref<1x128xf32, #tpu.memory_space<vmem>>, vector<1x128xf32>
    %c0_15 = arith.constant 0 : index
    %c0_16 = arith.constant 0 : index
    %76 = vector.load %arg1[%c0_15, %c0_16] : memref<192x64xf32, #tpu.memory_space<vmem>>, vector<128x64xf32>
    %cst_17 = arith.constant dense<0.000000e+00> : vector<2x64xf32>
    %77 = tpu.matmul %74, %76, %cst_17 {dimension_numbers = #tpu.dot_dimension_numbers<[1], [0], [0], [1], [0, 0, 1, 1], [], []>} : vector<2x128xf32>, vector<128x64xf32>, vector<2x64xf32> -> vector<2x64xf32>
    %78 = vector.extract_strided_slice %75 {offsets = [0, 0], sizes = [1, 64], strides = [1, 1]} : vector<1x128xf32> to vector<1x64xf32>
    %79 = vector.broadcast %78 : vector<1x64xf32> to vector<2x64xf32>
    %80 = arith.addf %77, %79 : vector<2x64xf32>
    %c128 = arith.constant 128 : index
    %c0_18 = arith.constant 0 : index
    %81 = vector.load %arg1[%c128, %c0_18] : memref<192x64xf32, #tpu.memory_space<vmem>>, vector<64x64xf32>
    %cst_19 = arith.constant dense<0.000000e+00> : vector<2x64xf32>
    %82 = tpu.matmul %80, %81, %cst_19 {dimension_numbers = #tpu.dot_dimension_numbers<[1], [0], [0], [1], [0, 0, 1, 1], [], []>} : vector<2x64xf32>, vector<64x64xf32>, vector<2x64xf32> -> vector<2x64xf32>
    %83 = vector.extract_strided_slice %75 {offsets = [0, 64], sizes = [1, 64], strides = [1, 1]} : vector<1x128xf32> to vector<1x64xf32>
    %84 = vector.broadcast %83 : vector<1x64xf32> to vector<2x64xf32>
    %85 = arith.addf %82, %84 : vector<2x64xf32>
    %86 = tpu.concatenate %80, %85 in 1 : vector<2x64xf32>, vector<2x64xf32> -> vector<2x128xf32>
    %c0_20 = arith.constant 0 : index
    %c0_21 = arith.constant 0 : index
    %87 = vector.load %arg3[%c0_20, %c0_21] : memref<2x128xf32, #tpu.memory_space<vmem>>, vector<2x128xf32>
    tpu.vector_store %arg3[%c0_20, %c0_21], %86 {strides = array<i32>} : memref<2x128xf32, #tpu.memory_space<vmem>>, vector<2x128xf32>,
    return
  }
}

</mosaic_0001>

<llo_original>
// kernel: fsra_forward.1
$region0: #{fsra_forward.1}
  #allocation0 [shape = 'u32[]', space=smem, size = 0x4, offset = 0x4, fixed_abs, tag = 'smem constant byte address 0x4 - core index']
  #allocation1 [shape = 'u32[72,128]{1,0:T(1,128)}', space=vmem, size = 0x9000, scoped, tag = 'internal scratch']
  %s0 = inlined_call_operand.vmem [shape: f32[2,32,16], index: 0, kind: input, shape index: {}]
  %s1 = inlined_call_operand.vmem [shape: f32[192,64], index: 1, kind: input, shape index: {}]
  %s2 = inlined_call_operand.vmem [shape: f32[1,128], index: 2, kind: input, shape index: {}]
  %s3 = inlined_call_operand.vmem [shape: f32[2,128], index: 3, kind: output, shape index: {}]
  %s4 = sld [smem:[#allocation0]]
  $region22: #{fsra_forward.1} parent=0
    _
  %s6 = ssub.s32 1, %s4
  %s7 = scalar_select 0, %s6, %s4
  // Predicated region
  $region2: #{fsra_forward.1} parent=0 // pred_check
    _
  $region3: #{fsra_forward.1} parent=0 // pred_check_branch
    %9 = sbr.rel (0) target = $region5
  $region4: #{fsra_forward.1} parent=0 // pred_region
    _
  $region5: #{fsra_forward.1} parent=0 // pred_fallthru
    _
  // Predicated region
  $region6: #{fsra_forward.1} parent=0 // pred_check
    _
  $region7: #{fsra_forward.1} parent=0 // pred_check_branch
    %11 = sbr.rel (0) target = $region9
  $region8: #{fsra_forward.1} parent=0 // pred_region
    _
  $region9: #{fsra_forward.1} parent=0 // pred_fallthru
    _
  // Predicated region
  $region10: #{fsra_forward.1} parent=0 // pred_check
    _
  $region11: #{fsra_forward.1} parent=0 // pred_check_branch
    %13 = sbr.rel (0) target = $region13
  $region12: #{fsra_forward.1} parent=0 // pred_region
    _
  $region13: #{fsra_forward.1} parent=0 // pred_fallthru
    _
  %v14 = vld [vmem:[%s0] sm:$0xff]
  %v15 = vld [vmem:[%s0 + $0x8] sm:$0xff]
  %v16 = vld [vmem:[%s0 + $0x10] sm:$0xff]
  %v17 = vld [vmem:[%s0 + $0x18] sm:$0xff]
  %v18 = vld [vmem:[%s0 + $0x20] sm:$0xff]
  %v19 = vld [vmem:[%s0 + $0x28] sm:$0xff]
  %v20 = vld [vmem:[%s0 + $0x30] sm:$0xff]
  %v21 = vld [vmem:[%s0 + $0x38] sm:$0xff]
  %vm22 = vcmask 130048
  %v23 = vsel %vm22, %v14, 0.0
  %v24 = vsel %vm22, %v15, 0.0
  %v25 = vadd.f32 %v23, %v24
  %v26 = vsel %vm22, %v16, 0.0
  %v27 = vadd.f32 %v25, %v26
  %v28 = vsel %vm22, %v17, 0.0
  %v29 = vadd.f32 %v27, %v28
  %v30 = vrot.slane %v29, 4
  %v31 = vadd.f32 %v29, %v30
  %v32 = vrot.slane %v31, 2
  %v33 = vadd.f32 %v31, %v32
  %v34 = vrot.slane %v33, 1
  %v35 = vadd.f32 %v33, %v34
  %v36 = vsel %vm22, %v18, 0.0
  %v37 = vsel %vm22, %v19, 0.0
  %v38 = vadd.f32 %v36, %v37
  %v39 = vsel %vm22, %v20, 0.0
  %v40 = vadd.f32 %v38, %v39
  %v41 = vsel %vm22, %v21, 0.0
  %v42 = vadd.f32 %v40, %v41
  %v43 = vrot.slane %v42, 4
  %v44 = vadd.f32 %v42, %v43
  %v45 = vrot.slane %v44, 2
  %v46 = vadd.f32 %v44, %v45
  %v47 = vrot.slane %v46, 1
  %v48 = vadd.f32 %v46, %v47
  %v49 = vrcp.pop 32.0
  %v50 = vmul.f32 32.0, %v49
  %v51 = vsub.f32 1.0, %v50
  %v52 = vmul.f32 %v49, %v51
  %v53 = vadd.f32 %v49, %v52
  %vm54 = vweird.f32 %v49
  %v55 = vsel %vm54, %v49, %v53
  %v56 = vmul.f32 %v35, %v55
  %v57 = vmul.f32 %v48, %v55
  %v58 = vlaneseq
  %v59 = vshrl.u32 %v58, 7
  %61 = vset.pattern.permute.xlu0 %v59
  %62 = vperm.xlu0 %61, %v56
  %v63 = vpop.permute.xlu0 %62
  %v64 = vlaneseq
  %v65 = vshrl.u32 %v64, 7
  %v66 = vadd.s32 %v65, 8
  %67 = vset.pattern.permute.xlu0 %v66
  %68 = vperm.xlu0 %67, %v56
  %v69 = vpop.permute.xlu0 %68
  %v70 = vlaneseq
  %v71 = vshrl.u32 %v70, 7
  %73 = vset.pattern.permute.xlu0 %v71
  %74 = vperm.xlu0 %73, %v57
  %v75 = vpop.permute.xlu0 %74
  %v76 = vlaneseq
  %v77 = vshrl.u32 %v76, 7
  %v78 = vadd.s32 %v77, 8
  %79 = vset.pattern.permute.xlu0 %v78
  %80 = vperm.xlu0 %79, %v57
  %v81 = vpop.permute.xlu0 %80
  %v82 = vlaneseq
  %v83 = vshrl.u32 %v82, 7
  %v84 = vadd.s32 %v83, 8
  %v85 = vlaneseq
  %v86 = vand.u32 %v85, 127
  %vm87 = vcmp.gt.f32.partialorder %v56, %v63
  %vm88 = vcmp.gt.f32.partialorder %v56, %v69
  %vm89 = vcmp.gt.f32.partialorder %v57, %v75
  %vm90 = vcmp.gt.f32.partialorder %v57, %v81
  %vm91 = vcmp.eq.f32.partialorder %v56, %v63
  %vm92 = vcmp.eq.f32.partialorder %v56, %v69
  %vm93 = vcmp.eq.f32.partialorder %v57, %v75
  %vm94 = vcmp.eq.f32.partialorder %v57, %v81
  %vm95 = vcmp.lt.s32.totalorder %v86, %v83
  %vm96 = vcmp.lt.s32.totalorder %v86, %v84
  %v97 = vsel %vm95, 1, 0
  %v98 = vsel %vm96, 1, 0
  %vm99 = vcmp.eq.s32.totalorder %v97, 1
  %vm100 = vcmp.eq.s32.totalorder %v98, 1
  %vm101 = vmand %vm91, %vm99
  %vm102 = vmand %vm92, %vm100
  %vm103 = vmand %vm93, %vm99
  %vm104 = vmand %vm94, %vm100
  %vm105 = vmor %vm87, %vm101
  %vm106 = vmor %vm88, %vm102
  %vm107 = vmor %vm89, %vm103
  %vm108 = vmor %vm90, %vm104
  %v109 = vsel %vm105, 1, 0
  %v110 = vsel %vm106, 1, 0
  %v111 = vsel %vm107, 1, 0
  %v112 = vsel %vm108, 1, 0
  %v113 = vsel %vm22, %v109, 0
  %v114 = vand.u32 %v113, 65535
  %v115 = vshrl.u32 %v113, 16
  %v116 = vcvt.s32.f32 %v114
  %v117 = vcvt.s32.f32 %v115
  %118 = vadd.xlane.f32.xlu0 %v116
  %v119 = vpop.xlane.xlu0 %118
  %120 = vadd.xlane.f32.xlu0 %v117
  %v121 = vpop.xlane.xlu0 %120
  %v122 = vcvt.f32.s32 %v119
  %v123 = vcvt.f32.s32 %v121
  %v124 = vshll.u32 %v123, 16
  %v125 = vadd.s32 %v124, %v122
  %v126 = vsel %vm22, %v110, 0
  %v127 = vand.u32 %v126, 65535
  %v128 = vshrl.u32 %v126, 16
  %v129 = vcvt.s32.f32 %v127
  %v130 = vcvt.s32.f32 %v128
  %131 = vadd.xlane.f32.xlu0 %v129
  %v132 = vpop.xlane.xlu0 %131
  %133 = vadd.xlane.f32.xlu0 %v130
  %v134 = vpop.xlane.xlu0 %133
  %v135 = vcvt.f32.s32 %v132
  %v136 = vcvt.f32.s32 %v134
  %v137 = vshll.u32 %v136, 16
  %v138 = vadd.s32 %v137, %v135
  %v139 = vsel %vm22, %v111, 0
  %v140 = vand.u32 %v139, 65535
  %v141 = vshrl.u32 %v139, 16
  %v142 = vcvt.s32.f32 %v140
  %v143 = vcvt.s32.f32 %v141
  %144 = vadd.xlane.f32.xlu0 %v142
  %v145 = vpop.xlane.xlu0 %144
  %146 = vadd.xlane.f32.xlu0 %v143
  %v147 = vpop.xlane.xlu0 %146
  %v148 = vcvt.f32.s32 %v145
  %v149 = vcvt.f32.s32 %v147
  %v150 = vshll.u32 %v149, 16
  %v151 = vadd.s32 %v150, %v148
  %v152 = vsel %vm22, %v112, 0
  %v153 = vand.u32 %v152, 65535
  %v154 = vshrl.u32 %v152, 16
  %v155 = vcvt.s32.f32 %v153
  %v156 = vcvt.s32.f32 %v154
  %157 = vadd.xlane.f32.xlu0 %v155
  %v158 = vpop.xlane.xlu0 %157
  %159 = vadd.xlane.f32.xlu0 %v156
  %v160 = vpop.xlane.xlu0 %159
  %v161 = vcvt.f32.s32 %v158
  %v162 = vcvt.f32.s32 %v160
  %v163 = vshll.u32 %v162, 16
  %v164 = vadd.s32 %v163, %v161
  %vm165 = vcmp.eq.s32.totalorder %v83, 0
  %v166 = vsel %vm165, 1, 0
  %vm167 = vcmp.eq.s32.totalorder %v166, 1
  %v168 = vsel %vm167, 0.0625, 0.0
  %vm169 = vcmp.ge.s32.totalorder %v125, 0
  %vm170 = vcmp.ge.s32.totalorder %v138, 0
  %vm171 = vcmp.ge.s32.totalorder %v151, 0
  %vm172 = vcmp.ge.s32.totalorder %v164, 0
  %vm173 = vcmp.lt.s32.totalorder %v125, 5
  %vm174 = vcmp.lt.s32.totalorder %v138, 5
  %vm175 = vcmp.lt.s32.totalorder %v151, 5
  %vm176 = vcmp.lt.s32.totalorder %v164, 5
  %vm177 = vmand %vm169, %vm173
  %vm178 = vmand %vm170, %vm174
  %vm179 = vmand %vm171, %vm175
  %vm180 = vmand %vm172, %vm176
  %vm181 = vcmp.eq.s32.totalorder %v83, 1
  %v182 = vsel %vm181, 1, 0
  %vm183 = vcmp.eq.s32.totalorder %v182, 1
  %v184 = vsel %vm177, 1, 0
  %v185 = vsel %vm178, 1, 0
  %v186 = vsel %vm179, 1, 0
  %v187 = vsel %vm180, 1, 0
  %vm188 = vcmp.eq.s32.totalorder %v184, 1
  %vm189 = vcmp.eq.s32.totalorder %v185, 1
  %vm190 = vcmp.eq.s32.totalorder %v186, 1
  %vm191 = vcmp.eq.s32.totalorder %v187, 1
  %v192 = vsel %vm188, 1, 0
  %v193 = vsel %vm189, 1, 0
  %v194 = vsel %vm190, 1, 0
  %v195 = vsel %vm191, 1, 0
  %v196 = vperm.slane %v192, %v86
  %v197 = vadd.s32 %v86, 4294967288
  %v198 = vperm.slane %v193, %v197
  %vm199 = vcmask 130112
  %v200 = vsel %vm199, %v198, %v196
  %v201 = vperm.slane %v194, %v86
  %v202 = vperm.slane %v195, %v197
  %v203 = vsel %vm199, %v202, %v201
  %vm204 = vcmask 1041409
  %vm205 = vcmask 1042434
  %v206 = vsel %vm205, %v200, %v200
  %vm207 = vcmask 1043459
  %v208 = vsel %vm207, %v200, %v206
  %v209 = vsel %vm205, %v203, %v203
  %v210 = vsel %vm207, %v203, %v209
  %vm211 = vcmp.ne.s32.totalorder %v208, 0
  %vm212 = vcmp.ne.s32.totalorder %v210, 0
  %vm213 = vmand %vm183, %vm211
  %vm214 = vmand %vm183, %vm212
  %v215 = vsel %vm213, 0.2, %v168
  %v216 = vsel %vm214, 0.2, %v168
  %vm217 = vcmp.ge.s32.totalorder %v125, 5
  %vm218 = vcmp.ge.s32.totalorder %v138, 5
  %vm219 = vcmp.ge.s32.totalorder %v151, 5
  %vm220 = vcmp.ge.s32.totalorder %v164, 5
  %vm221 = vcmp.lt.s32.totalorder %v125, 10
  %vm222 = vcmp.lt.s32.totalorder %v138, 10
  %vm223 = vcmp.lt.s32.totalorder %v151, 10
  %vm224 = vcmp.lt.s32.totalorder %v164, 10
  %vm225 = vmand %vm217, %vm221
  %vm226 = vmand %vm218, %vm222
  %vm227 = vmand %vm219, %vm223
  %vm228 = vmand %vm220, %vm224
  %vm229 = vcmp.eq.s32.totalorder %v83, 2
  %v230 = vsel %vm229, 1, 0
  %vm231 = vcmp.eq.s32.totalorder %v230, 1
  %v232 = vsel %vm225, 1, 0
  %v233 = vsel %vm226, 1, 0
  %v234 = vsel %vm227, 1, 0
  %v235 = vsel %vm228, 1, 0
  %vm236 = vcmp.eq.s32.totalorder %v232, 1
  %vm237 = vcmp.eq.s32.totalorder %v233, 1
  %vm238 = vcmp.eq.s32.totalorder %v234, 1
  %vm239 = vcmp.eq.s32.totalorder %v235, 1
  %v240 = vsel %vm236, 1, 0
  %v241 = vsel %vm237, 1, 0
  %v242 = vsel %vm238, 1, 0
  %v243 = vsel %vm239, 1, 0
  %v244 = vperm.slane %v240, %v86
  %v245 = vperm.slane %v241, %v197
  %v246 = vsel %vm199, %v245, %v244
  %v247 = vperm.slane %v242, %v86
  %v248 = vperm.slane %v243, %v197
  %v249 = vsel %vm199, %v248, %v247
  %v250 = vsel %vm205, %v246, %v246
  %v251 = vsel %vm207, %v246, %v250
  %v252 = vsel %vm205, %v249, %v249
  %v253 = vsel %vm207, %v249, %v252
  %vm254 = vcmp.ne.s32.totalorder %v251, 0
  %vm255 = vcmp.ne.s32.totalorder %v253, 0
  %vm256 = vmand %vm231, %vm254
  %vm257 = vmand %vm231, %vm255
  %v258 = vsel %vm256, 0.2, %v215
  %v259 = vsel %vm257, 0.2, %v216
  %vm260 = vcmp.ge.s32.totalorder %v125, 10
  %vm261 = vcmp.ge.s32.totalorder %v138, 10
  %vm262 = vcmp.ge.s32.totalorder %v151, 10
  %vm263 = vcmp.ge.s32.totalorder %v164, 10
  %vm264 = vcmp.lt.s32.totalorder %v125, 16
  %vm265 = vcmp.lt.s32.totalorder %v138, 16
  %vm266 = vcmp.lt.s32.totalorder %v151, 16
  %vm267 = vcmp.lt.s32.totalorder %v164, 16
  %vm268 = vmand %vm260, %vm264
  %vm269 = vmand %vm261, %vm265
  %vm270 = vmand %vm262, %vm266
  %vm271 = vmand %vm263, %vm267
  %vm272 = vcmp.eq.s32.totalorder %v83, 3
  %v273 = vsel %vm272, 1, 0
  %vm274 = vcmp.eq.s32.totalorder %v273, 1
  %v275 = vsel %vm268, 1, 0
  %v276 = vsel %vm269, 1, 0
  %v277 = vsel %vm270, 1, 0
  %v278 = vsel %vm271, 1, 0
  %vm279 = vcmp.eq.s32.totalorder %v275, 1
  %vm280 = vcmp.eq.s32.totalorder %v276, 1
  %vm281 = vcmp.eq.s32.totalorder %v277, 1
  %vm282 = vcmp.eq.s32.totalorder %v278, 1
  %v283 = vsel %vm279, 1, 0
  %v284 = vsel %vm280, 1, 0
  %v285 = vsel %vm281, 1, 0
  %v286 = vsel %vm282, 1, 0
  %v287 = vperm.slane %v283, %v86
  %v288 = vperm.slane %v284, %v197
  %v289 = vsel %vm199, %v288, %v287
  %v290 = vperm.slane %v285, %v86
  %v291 = vperm.slane %v286, %v197
  %v292 = vsel %vm199, %v291, %v290
  %v293 = vsel %vm205, %v289, %v289
  %v294 = vsel %vm207, %v289, %v293
  %v295 = vsel %vm205, %v292, %v292
  %v296 = vsel %vm207, %v292, %v295
  %vm297 = vcmp.ne.s32.totalorder %v294, 0
  %vm298 = vcmp.ne.s32.totalorder %v296, 0
  %vm299 = vmand %vm274, %vm297
  %vm300 = vmand %vm274, %vm298
  %v301 = vsel %vm299, 0.16666667, %v258
  %v302 = vsel %vm300, 0.16666667, %v259
  %v304 = vsel %vm22, %v301, 0
  %v307 = vsel %vm22, %v14, 0
  %v310 = vsel %vm22, %v15, 0
  %v313 = vsel %vm22, %v16, 0
  %v316 = vsel %vm22, %v17, 0
  %318 = vmatpush.xpose.msra.mxu0 0.0
  %319 = vmatpush.xpose.msra.mxu0 0.0
  %320 = vmatpush.xpose.msra.mxu0 0.0
  %321 = vmatpush.xpose.msra.mxu0 0.0
  %322 = vmatpush.xpose.msra.mxu0 0.0
  %323 = vmatpush.xpose.msra.mxu0 0.0
  %324 = vmatpush.xpose.msra.mxu0 0.0
  %325 = vmatpush.xpose.msra.mxu0 0.0
  %326 = vmatpush.xpose.msra.mxu0 0.0
  %327 = vmatpush.xpose.msra.mxu0 0.0
  %328 = vmatpush.xpose.msra.mxu0 0.0
  %329 = vmatpush.xpose.msra.mxu0 0.0
  %330 = vmatpush.xpose.msra.mxu0 %v316
  %331 = vmatpush.xpose.msra.mxu0 %v313
  %332 = vmatpush.xpose.msra.mxu0 %v310
  %333 = vmatpush.xpose.msra.mxu0 %v307
  %334 = vmatmul.f32.gmra.mxu0 %v304
  %v335 = vpop.f32.mrf.mxu0
  %v336 = vadd.f32 0.0, %v335
  %337 = vdwg.mxu0
  %v339 = vsel %vm22, %v302, 0
  %v342 = vsel %vm22, %v18, 0
  %v345 = vsel %vm22, %v19, 0
  %v348 = vsel %vm22, %v20, 0
  %v351 = vsel %vm22, %v21, 0
  %353 = vmatpush.xpose.msra.mxu0 0.0
  %354 = vmatpush.xpose.msra.mxu0 0.0
  %355 = vmatpush.xpose.msra.mxu0 0.0
  %356 = vmatpush.xpose.msra.mxu0 0.0
  %357 = vmatpush.xpose.msra.mxu0 0.0
  %358 = vmatpush.xpose.msra.mxu0 0.0
  %359 = vmatpush.xpose.msra.mxu0 0.0
  %360 = vmatpush.xpose.msra.mxu0 0.0
  %361 = vmatpush.xpose.msra.mxu0 0.0
  %362 = vmatpush.xpose.msra.mxu0 0.0
  %363 = vmatpush.xpose.msra.mxu0 0.0
  %364 = vmatpush.xpose.msra.mxu0 0.0
  %365 = vmatpush.xpose.msra.mxu0 %v351
  %366 = vmatpush.xpose.msra.mxu0 %v348
  %367 = vmatpush.xpose.msra.mxu0 %v345
  %368 = vmatpush.xpose.msra.mxu0 %v342
  %369 = vmatmul.f32.gmra.mxu0 %v339
  %v370 = vpop.f32.mrf.mxu0
  %v371 = vadd.f32 0.0, %v370
  %372 = vdwg.mxu0
  %v375 = vrot.slane %v371, 7
  %v376 = vsel %vm204, %v375, %v336
  %v378 = vrot.slane %v336, 1
  %v379 = vsel %vm204, %v371, %v378
  %380 = vrot.lane.b32.xlu0 %v379, 32
  %v381 = vpop.permute.xlu0 %380
  %v383 = vrot.slane %v336, 2
  %v384 = vrot.slane %v371, 1
  %v385 = vsel %vm204, %v384, %v383
  %386 = vrot.lane.b32.xlu0 %v385, 64
  %v387 = vpop.permute.xlu0 %386
  %v389 = vrot.slane %v336, 3
  %v390 = vrot.slane %v371, 2
  %v391 = vsel %vm204, %v390, %v389
  %392 = vrot.lane.b32.xlu0 %v391, 96
  %v393 = vpop.permute.xlu0 %392
  %vm395 = vcmask 261120
  %v396 = vsel %vm395, %v376, %v381
  %vm397 = vcmask 523264
  %v398 = vsel %vm397, %v396, %v387
  %vm399 = vcmask 785408
  %v400 = vsel %vm399, %v398, %v393
  %v401 = vld [vmem:[%s2] sm:$0x1]
  %v402 = vld [vmem:[%s1] sm:$0xff]
  %v403 = vld [vmem:[%s1 + $0x8] sm:$0xff]
  %v404 = vld [vmem:[%s1 + $0x10] sm:$0xff]
  %v405 = vld [vmem:[%s1 + $0x18] sm:$0xff]
  %v406 = vld [vmem:[%s1 + $0x20] sm:$0xff]
  %v407 = vld [vmem:[%s1 + $0x28] sm:$0xff]
  %v408 = vld [vmem:[%s1 + $0x30] sm:$0xff]
  %v409 = vld [vmem:[%s1 + $0x38] sm:$0xff]
  %v410 = vld [vmem:[%s1 + $0x40] sm:$0xff]
  %v411 = vld [vmem:[%s1 + $0x48] sm:$0xff]
  %v412 = vld [vmem:[%s1 + $0x50] sm:$0xff]
  %v413 = vld [vmem:[%s1 + $0x58] sm:$0xff]
  %v414 = vld [vmem:[%s1 + $0x60] sm:$0xff]
  %v415 = vld [vmem:[%s1 + $0x68] sm:$0xff]
  %v416 = vld [vmem:[%s1 + $0x70] sm:$0xff]
  %v417 = vld [vmem:[%s1 + $0x78] sm:$0xff]
  %v419 = vperm.slane %v401, 0
  %421 = vmatpush.msra.mxu0 %v417
  %422 = vmatpush.msra.mxu0 %v416
  %423 = vmatpush.msra.mxu0 %v415
  %424 = vmatpush.msra.mxu0 %v414
  %425 = vmatpush.msra.mxu0 %v413
  %426 = vmatpush.msra.mxu0 %v412
  %427 = vmatpush.msra.mxu0 %v411
  %428 = vmatpush.msra.mxu0 %v410
  %429 = vmatpush.msra.mxu0 %v409
  %430 = vmatpush.msra.mxu0 %v408
  %431 = vmatpush.msra.mxu0 %v407
  %432 = vmatpush.msra.mxu0 %v406
  %433 = vmatpush.msra.mxu0 %v405
  %434 = vmatpush.msra.mxu0 %v404
  %435 = vmatpush.msra.mxu0 %v403
  %436 = vmatpush.msra.mxu0 %v402
  %437 = vmatmul.f32.gmra.mxu0 %v400
  %v438 = vpop.f32.mrf.mxu0
  %v439 = vadd.f32 %v419, %v438
  %440 = vdwg.mxu0
  %v441 = vld [vmem:[%s1 + $0x80] sm:$0xff]
  %v442 = vld [vmem:[%s1 + $0x88] sm:$0xff]
  %v443 = vld [vmem:[%s1 + $0x90] sm:$0xff]
  %v444 = vld [vmem:[%s1 + $0x98] sm:$0xff]
  %v445 = vld [vmem:[%s1 + $0xa0] sm:$0xff]
  %v446 = vld [vmem:[%s1 + $0xa8] sm:$0xff]
  %v447 = vld [vmem:[%s1 + $0xb0] sm:$0xff]
  %v448 = vld [vmem:[%s1 + $0xb8] sm:$0xff]
  %449 = vrot.lane.b32.xlu0 %v419, 64
  %v450 = vpop.permute.xlu0 %449
  %v453 = vsel %vm397, %v439, 0
  %455 = vmatpush.msra.mxu0 0.0
  %456 = vmatpush.msra.mxu0 0.0
  %457 = vmatpush.msra.mxu0 0.0
  %458 = vmatpush.msra.mxu0 0.0
  %459 = vmatpush.msra.mxu0 0.0
  %460 = vmatpush.msra.mxu0 0.0
  %461 = vmatpush.msra.mxu0 0.0
  %462 = vmatpush.msra.mxu0 0.0
  %463 = vmatpush.msra.mxu0 %v448
  %464 = vmatpush.msra.mxu0 %v447
  %465 = vmatpush.msra.mxu0 %v446
  %466 = vmatpush.msra.mxu0 %v445
  %467 = vmatpush.msra.mxu0 %v444
  %468 = vmatpush.msra.mxu0 %v443
  %469 = vmatpush.msra.mxu0 %v442
  %470 = vmatpush.msra.mxu0 %v441
  %471 = vmatmul.f32.gmra.mxu0 %v453
  %v472 = vpop.f32.mrf.mxu0
  %v473 = vadd.f32 %v450, %v472
  %474 = vdwg.mxu0
  %476 = vrot.lane.b32.xlu0 %v473, 64
  %v477 = vpop.permute.xlu0 %476
  %v479 = vsel %vm397, %v439, %v477
  %480 = vst [vmem:[%s3] sm:$0x3] %v479
  // Predicated region
  $region14: #{fsra_forward.1} parent=0 // pred_check
    _
  $region15: #{fsra_forward.1} parent=0 // pred_check_branch
    %482 = sbr.rel (0) target = $region17
  $region16: #{fsra_forward.1} parent=0 // pred_region
    _
  $region17: #{fsra_forward.1} parent=0 // pred_fallthru
    _
  // Predicated region
  $region18: #{fsra_forward.1} parent=0 // pred_check
    _
  $region19: #{fsra_forward.1} parent=0 // pred_check_branch
    %484 = sbr.rel (0) target = $region21
  $region20: #{fsra_forward.1} parent=0 // pred_region
    _
  $region21: #{fsra_forward.1} parent=0 // pred_fallthru
    _

</llo_original>
